<compile_context>
chip_gen: v6e
topology: v6e:2x2x1
jax: 0.10.0
libtpu: 0.0.40
codegen_flags: <defaults>
</compile_context>

<pallas_src>
import functools
import math

import jax
import jax.numpy as jnp
from jax.experimental import pallas as pl
from jax.experimental.pallas import tpu as pltpu


def _vmem_capacity_bytes(default=64 << 20):
    """Per-core VMEM capacity, with a conservative (v7x-sized) fallback."""
    try:
        info = pltpu.get_tpu_info()
        cap = getattr(info, "vmem_capacity_bytes", None)
        if cap:
            return int(cap)
    except Exception:
        pass
    return default


def _patch_merging_kernel(x_ref, w_ref, c_ref, o_ref, *, eps, inv_4c, matmul_dtype):
    """One grid step: tr row-groups = tr * (W/2) merged patches.

    x_ref: (tr, 2, W/2, 2C)  raw input rows; dim 1 is dh (row parity) of the
                             2x2 merge; last dim is [dw=0 chans | dw=1 chans].
    w_ref: (2, 2C, 2C)       gamma-folded reduction weight, regrouped per dh
                             slab (w_ref[0] <-> dh=0, w_ref[1] <-> dh=1).
    c_ref: (2, 2C) f32       row 0: column sums of the folded weight,
                             row 1: beta @ W^T.
    o_ref: (tr*W/2, 2C)
    """
    tr, _, wp, two_c = x_ref.shape
    tm = tr * wp

    xb = x_ref[...]
    # Native-dtype slabs; with W/2 % 8 == 0 these reshapes are pure retiles.
    a = xb[:, 0, :, :].reshape(tm, two_c)   # lanes: [x0 | x2]
    b = xb[:, 1, :, :].reshape(tm, two_c)   # lanes: [x1 | x3]

    f32 = jnp.float32
    # One-pass LayerNorm statistics over all 4C merged channels, accumulated
    # in f32 straight from the native-dtype slabs (no f32 slab copies).
    s = (jnp.sum(a, axis=-1, keepdims=True, dtype=f32)
         + jnp.sum(b, axis=-1, keepdims=True, dtype=f32))
    s2 = (jnp.sum(a * a, axis=-1, keepdims=True, dtype=f32)
          + jnp.sum(b * b, axis=-1, keepdims=True, dtype=f32))
    mean = s * inv_4c
    var = s2 * inv_4c - mean * mean
    inv = jax.lax.rsqrt(var + eps)

    # Raw-slab matmuls (gamma already folded into W), f32 accumulation.  The
    # mean subtraction lives in the epilogue via the precomputed column sums:
    #   (x - mean) @ Wf == x @ Wf - mean * colsum(Wf).
    acc = jnp.dot(a.astype(matmul_dtype), w_ref[0], preferred_element_type=f32)
    acc = acc + jnp.dot(b.astype(matmul_dtype), w_ref[1], preferred_element_type=f32)

    cc = c_ref[...]
    colsum = cc[0:1, :]
    bias = cc[1:2, :]
    out = (acc - mean * colsum) * inv + bias
    o_ref[...] = out.astype(o_ref.dtype)


def patch_merging_forward(x, gamma, beta, weight, input_resolution, *,
                          eps=1e-5, matmul_dtype=None):
    """x: (B, H*W, C) -> (B, (H//2)*(W//2), 2*C), matching the PyTorch module.

    matmul_dtype: dtype for the MXU operands (default: x.dtype).  Passing
    jnp.bfloat16 with f32 activations is recommended on v7x.
    """
    h, w = input_resolution
    b, seq_len, c = x.shape
    assert seq_len == h * w, "input feature has wrong size"
    assert h % 2 == 0 and w % 2 == 0, f"x size ({h}*{w}) are not even."
    hp, wp = h // 2, w // 2
    two_c, four_c = 2 * c, 4 * c
    r = b * hp                      # merged row-groups (one per output H row)
    n_rows = r * wp                 # total merged patches

    mdt = jnp.dtype(matmul_dtype) if matmul_dtype is not None else jnp.dtype(x.dtype)

    # Free reshape: row-major (B, H, W, C) == (B*H/2, 2, W/2, 2C); dim 1 is dh,
    # last dim is [dw=0 channels | dw=1 channels] — the 2x2 gather is fused.
    x4 = x.reshape(r, 2, wp, two_c)

    # Fold the LayerNorm affine into the reduction weight / bias, and
    # precompute the folded weight's column sums so the mean subtraction can
    # live in the matmul epilogue.  (These are parameters; in a real model
    # precompute once — cost here is O(4C*2C).)
    w_t = weight.T.astype(jnp.float32)                     # (4C, 2C)
    w_fold = gamma.astype(jnp.float32)[:, None] * w_t      # (4C, 2C)
    bias = beta.astype(jnp.float32) @ w_t                  # (2C,)
    colsum = jnp.sum(w_fold, axis=0)                       # (2C,)
    consts = jnp.stack([colsum, bias], axis=0)             # (2, 2C) f32
    # Regroup the 4C rows to the in-kernel slab layout:
    #   dh=0 slab lanes [x0 | x2] -> rows [0:C] ++ [2C:3C]
    #   dh=1 slab lanes [x1 | x3] -> rows [C:2C] ++ [3C:4C]
    w_a = jnp.concatenate([w_fold[0:c], w_fold[2 * c:3 * c]], axis=0)
    w_b = jnp.concatenate([w_fold[c:2 * c], w_fold[3 * c:4 * c]], axis=0)
    w_stack = jnp.stack([w_a, w_b], axis=0).astype(mdt)    # (2, 2C, 2C)

    # ---- Row-tile selection (device-aware, HBM-roofline oriented) ----------
    itemsize = jnp.dtype(x.dtype).itemsize
    m_itemsize = mdt.itemsize
    hbm_bytes_per_row = (four_c + two_c) * itemsize        # x read + out write
    # Per-merged-row VMEM footprint of one grid step: double-buffered input
    # and output blocks plus in-kernel f32 intermediates (acc + temp headroom).
    vmem_bytes_per_row = (2 * four_c * itemsize
                          + 2 * two_c * itemsize
                          + 3 * two_c * 4)

    vmem_cap = _vmem_capacity_bytes()                      # 64 MiB fallback (v7x)
    vmem_budget = min(vmem_cap // 2, 64 << 20)             # ~32 MiB v7x, ~64 MiB v5e/v6e

    rows_cap = max(1, vmem_budget // vmem_bytes_per_row)
    rows_target = min(8192, rows_cap)                      # 8192 rows ~ 12 MB traffic @ C=64 f32
    tr = max(1, min(r, rows_target // max(1, wp)))

    # Prefer >=4 grid steps (software-pipelining headroom; >=2 steps per
    # TensorCore under megacore sharding on v7x), but only if each step still
    # moves >=2 MiB of HBM traffic.  Tiny inputs simply run as grid=(1,).
    if pl.cdiv(r, tr) < 4:
        tr4 = pl.cdiv(r, 4)
        if tr4 * wp * hbm_bytes_per_row >= (2 << 20):
            tr = tr4

    if wp % 8 != 0:
        # Keep the flattened (tr*W/2, 2C) output block sublane-aligned.
        # TODO(synk): for production odd Swin widths (W/2 = 7/14/28) the
        # in-kernel slab reshape still pays a per-step relayout; pad W to a
        # multiple of 16 upstream to avoid it entirely.
        align = 8 // math.gcd(wp, 8)
        tr = min(r, max(align, (tr // align) * align))

    grid = (pl.cdiv(r, tr),)        # partial edge block is masked by Pallas

    # Explicit VMEM need: blocks + constants + in-kernel f32 temps + margin.
    tm = tr * wp
    vmem_need = (2 * tr * 2 * wp * two_c * itemsize        # input block, 2 buffers
                 + 2 * tm * two_c * itemsize               # output block, 2 buffers
                 + 2 * two_c * two_c * m_itemsize          # folded weight, 1 buffer
                 + 2 * two_c * 4                           # colsum / bias
                 + 3 * tm * two_c * 4)                     # f32 acc + temp headroom
    vmem_limit = int(max(16 << 20, min(vmem_cap, vmem_need + (8 << 20))))

    cost = pl.CostEstimate(
        flops=int(2 * n_rows * four_c * two_c + 10 * n_rows * four_c),
        transcendentals=int(n_rows),
        bytes_accessed=int(n_rows * four_c * itemsize      # x read exactly once
                           + n_rows * two_c * itemsize     # output write
                           + 2 * two_c * two_c * m_itemsize
                           + 2 * two_c * 4),
    )

    kernel = functools.partial(_patch_merging_kernel, eps=eps,
                               inv_4c=1.0 / four_c, matmul_dtype=mdt)

    out = pl.pallas_call(
        kernel,
        out_shape=jax.ShapeDtypeStruct((n_rows, two_c), x.dtype),
        grid=grid,
        in_specs=[
            # Fused 2x2 gather: one contiguous block of raw x per grid step.
            pl.BlockSpec((tr, 2, wp, two_c), lambda i: (i, 0, 0, 0)),
            # Grid-invariant constants: constant index map, single-buffered.
            pl.BlockSpec((2, two_c, two_c), lambda i: (0, 0, 0),
                         pipeline_mode=pl.Buffered(1)),
            pl.BlockSpec((2, two_c), lambda i: (0, 0),
                         pipeline_mode=pl.Buffered(1)),
        ],
        out_specs=pl.BlockSpec((tr * wp, two_c), lambda i: (i, 0)),
        compiler_params=pltpu.CompilerParams(
            dimension_semantics=("parallel",),
            vmem_limit_bytes=vmem_limit),
        cost_estimate=cost,
    )(x4, w_stack, consts)

    return out.reshape(b, hp * wp, two_c)


def patch_merging_reference(x, gamma, beta, weight, input_resolution, *, eps=1e-5):
    """Pure-JAX reference mirroring the PyTorch forward."""
    h, w = input_resolution
    b, seq_len, c = x.shape
    xv = x.reshape(b, h, w, c)
    x0 = xv[:, 0::2, 0::2, :]
    x1 = xv[:, 1::2, 0::2, :]
    x2 = xv[:, 0::2, 1::2, :]
    x3 = xv[:, 1::2, 1::2, :]
    xm = jnp.concatenate([x0, x1, x2, x3], axis=-1).reshape(b, -1, 4 * c)
    mean = jnp.mean(xm, axis=-1, keepdims=True)
    var = jnp.mean((xm - mean) ** 2, axis=-1, keepdims=True)
    xn = (xm - mean) * jax.lax.rsqrt(var + eps) * gamma + beta
    return jnp.einsum("blk,ok->blo", xn, weight)


if __name__ == "__main__":
    key = jax.random.PRNGKey(0)
    k_x, k_w, k_g, k_b = jax.random.split(key, 4)

    # Small config consistent with the module; C=64 makes 2C=128 (lane-dense
    # output / MXU-friendly K,N) and W/2=8 (sublane-aligned slab reshapes).
    B, H, W, C = 2, 16, 16, 64               # x: (B, H*W, C) = (2, 256, 64)
    input_resolution = (H, W)

    x = jax.random.normal(k_x, (B, H * W, C), dtype=jnp.float32)

    # Deterministic synthetic parameters (shapes per nn.Module __init__).
    weight = jax.random.normal(k_w, (2 * C, 4 * C), dtype=jnp.float32) * 0.05  # Linear(4C->2C, bias=False)
    gamma = jnp.ones((4 * C,), dtype=jnp.float32) + 0.01 * jax.random.normal(
        k_g, (4 * C,), dtype=jnp.float32)
    beta = 0.01 * jax.random.normal(k_b, (4 * C,), dtype=jnp.float32)

    ref = patch_merging_reference(x, gamma, beta, weight, input_resolution)

    # f32 path (matmul operands in the input dtype).
    out = jax.block_until_ready(
        patch_merging_forward(x, gamma, beta, weight, input_resolution))
    assert out.shape == (B, (H // 2) * (W // 2), 2 * C), out.shape
    max_err = float(jnp.max(jnp.abs(out - ref)))
    assert jnp.allclose(out, ref, atol=5e-4, rtol=5e-4), max_err

    # bf16 MXU-operand path (recommended for f32 activations on v7x).
    out_bf16 = jax.block_until_ready(
        patch_merging_forward(x, gamma, beta, weight, input_resolution,
                              matmul_dtype=jnp.bfloat16))
    max_err_bf16 = float(jnp.max(jnp.abs(out_bf16 - ref)))
    assert jnp.allclose(out_bf16, ref, atol=5e-2, rtol=5e-2), max_err_bf16

    print("KERNEL_OK")
</pallas_src>

<mosaic_0001>
module attributes {stable_mosaic.version = 11 : i64} {
  func.func @_patch_merging_kernel(%arg0: i32, %arg1: memref<16x2x8x128xf32, #tpu.memory_space<vmem>>, %arg2: memref<2x128x128xf32, #tpu.memory_space<vmem>>, %arg3: memref<2x128xf32, #tpu.memory_space<vmem>>, %arg4: memref<128x128xf32, #tpu.memory_space<vmem>>) attributes {dimension_semantics = [#tpu.dimension_semantics<parallel>], iteration_bounds = array<i64: 1>, scalar_prefetch = 0 : i64, scratch_operands = 0 : i64, tpu.core_type = #tpu.core_type<tc>, window_params = [{transform_indices = @transform_0, window_bounds = array<i64: 16, 2, 8, 128>}, {pipeline_mode = #tpu.pipeline_mode<synchronous>, transform_indices = @transform_1, window_bounds = array<i64: 2, 128, 128>}, {pipeline_mode = #tpu.pipeline_mode<synchronous>, transform_indices = @transform_2, window_bounds = array<i64: 2, 128>}, {transform_indices = @transform_3, window_bounds = array<i64: 128, 128>}]} {
    %c0 = arith.constant 0 : index
    %c0_0 = arith.constant 0 : index
    %c0_1 = arith.constant 0 : index
    %c0_2 = arith.constant 0 : index
    %0 = vector.load %arg1[%c0, %c0_0, %c0_1, %c0_2] : memref<16x2x8x128xf32, #tpu.memory_space<vmem>>, vector<16x2x8x128xf32>
    %1 = vector.extract_strided_slice %0 {offsets = [0, 0, 0, 0], sizes = [16, 1, 8, 128], strides = [1, 1, 1, 1]} : vector<16x2x8x128xf32> to vector<16x1x8x128xf32>
    %2 = vector.shape_cast %1 : vector<16x1x8x128xf32> to vector<16x8x128xf32>
    %3 = vector.shape_cast %2 : vector<16x8x128xf32> to vector<128x128xf32>
    %4 = vector.extract_strided_slice %0 {offsets = [0, 1, 0, 0], sizes = [16, 1, 8, 128], strides = [1, 1, 1, 1]} : vector<16x2x8x128xf32> to vector<16x1x8x128xf32>
    %5 = vector.shape_cast %4 : vector<16x1x8x128xf32> to vector<16x8x128xf32>
    %6 = vector.shape_cast %5 : vector<16x8x128xf32> to vector<128x128xf32>
    %cst = arith.constant dense<0.000000e+00> : vector<128xf32>
    %7 = vector.multi_reduction <add>, %3, %cst [1] : vector<128x128xf32> to vector<128xf32>
    %8 = vector.shape_cast %7 : vector<128xf32> to vector<128x1xf32>
    %cst_3 = arith.constant dense<0.000000e+00> : vector<128xf32>
    %9 = vector.multi_reduction <add>, %6, %cst_3 [1] : vector<128x128xf32> to vector<128xf32>
    %10 = vector.shape_cast %9 : vector<128xf32> to vector<128x1xf32>
    %11 = arith.addf %8, %10 : vector<128x1xf32>
    %12 = arith.mulf %3, %3 : vector<128x128xf32>
    %cst_4 = arith.constant dense<0.000000e+00> : vector<128xf32>
    %13 = vector.multi_reduction <add>, %12, %cst_4 [1] : vector<128x128xf32> to vector<128xf32>
    %14 = vector.shape_cast %13 : vector<128xf32> to vector<128x1xf32>
    %15 = arith.mulf %6, %6 : vector<128x128xf32>
    %cst_5 = arith.constant dense<0.000000e+00> : vector<128xf32>
    %16 = vector.multi_reduction <add>, %15, %cst_5 [1] : vector<128x128xf32> to vector<128xf32>
    %17 = vector.shape_cast %16 : vector<128xf32> to vector<128x1xf32>
    %18 = arith.addf %14, %17 : vector<128x1xf32>
    %cst_6 = arith.constant 3.906250e-03 : f32
    %19 = vector.broadcast %cst_6 : f32 to vector<128x1xf32>
    %20 = arith.mulf %11, %19 : vector<128x1xf32>
    %cst_7 = arith.constant 3.906250e-03 : f32
    %21 = vector.broadcast %cst_7 : f32 to vector<128x1xf32>
    %22 = arith.mulf %18, %21 : vector<128x1xf32>
    %23 = arith.mulf %20, %20 : vector<128x1xf32>
    %24 = arith.subf %22, %23 : vector<128x1xf32>
    %cst_8 = arith.constant 9.99999974E-6 : f32
    %25 = vector.broadcast %cst_8 : f32 to vector<128x1xf32>
    %26 = arith.addf %24, %25 : vector<128x1xf32>
    %27 = math.rsqrt %26 : vector<128x1xf32>
    %c0_9 = arith.constant 0 : index
    %c0_10 = arith.constant 0 : index
    %c0_11 = arith.constant 0 : index
    %28 = vector.load %arg2[%c0_9, %c0_10, %c0_11] : memref<2x128x128xf32, #tpu.memory_space<vmem>>, vector<1x128x128xf32>
    %29 = vector.shape_cast %28 : vector<1x128x128xf32> to vector<128x128xf32>
    %cst_12 = arith.constant dense<0.000000e+00> : vector<128x128xf32>
    %30 = tpu.matmul %3, %29, %cst_12 {dimension_numbers = #tpu.dot_dimension_numbers<[1], [0], [0], [1], [0, 0, 1, 1], [], []>} : vector<128x128xf32>, vector<128x128xf32>, vector<128x128xf32> -> vector<128x128xf32>
    %c1 = arith.constant 1 : index
    %c0_13 = arith.constant 0 : index
    %c0_14 = arith.constant 0 : index
    %31 = vector.load %arg2[%c1, %c0_13, %c0_14] : memref<2x128x128xf32, #tpu.memory_space<vmem>>, vector<1x128x128xf32>
    %32 = vector.shape_cast %31 : vector<1x128x128xf32> to vector<128x128xf32>
    %cst_15 = arith.constant dense<0.000000e+00> : vector<128x128xf32>
    %33 = tpu.matmul %6, %32, %cst_15 {dimension_numbers = #tpu.dot_dimension_numbers<[1], [0], [0], [1], [0, 0, 1, 1], [], []>} : vector<128x128xf32>, vector<128x128xf32>, vector<128x128xf32> -> vector<128x128xf32>
    %34 = arith.addf %30, %33 : vector<128x128xf32>
    %c0_16 = arith.constant 0 : index
    %c0_17 = arith.constant 0 : index
    %35 = vector.load %arg3[%c0_16, %c0_17] : memref<2x128xf32, #tpu.memory_space<vmem>>, vector<2x128xf32>
    %36 = vector.extract_strided_slice %35 {offsets = [0, 0], sizes = [1, 128], strides = [1, 1]} : vector<2x128xf32> to vector<1x128xf32>
    %37 = vector.extract_strided_slice %35 {offsets = [1, 0], sizes = [1, 128], strides = [1, 1]} : vector<2x128xf32> to vector<1x128xf32>
    %38 = vector.broadcast %20 : vector<128x1xf32> to vector<128x128xf32>
    %39 = vector.broadcast %36 : vector<1x128xf32> to vector<128x128xf32>
    %40 = arith.mulf %38, %39 : vector<128x128xf32>
    %41 = arith.subf %34, %40 : vector<128x128xf32>
    %42 = vector.broadcast %27 : vector<128x1xf32> to vector<128x128xf32>
    %43 = arith.mulf %41, %42 : vector<128x128xf32>
    %44 = vector.broadcast %37 : vector<1x128xf32> to vector<128x128xf32>
    %45 = arith.addf %43, %44 : vector<128x128xf32>
    %c0_18 = arith.constant 0 : index
    %c0_19 = arith.constant 0 : index
    %46 = vector.load %arg4[%c0_18, %c0_19] : memref<128x128xf32, #tpu.memory_space<vmem>>, vector<128x128xf32>
    tpu.vector_store %arg4[%c0_18, %c0_19], %45 {strides = array<i32>} : memref<128x128xf32, #tpu.memory_space<vmem>>, vector<128x128xf32>,
    return
  }
  func.func @transform_0(%arg0: i32) -> (i32, i32, i32, i32) {
    %c0_i32 = arith.constant 0 : i32
    %c0_i32_0 = arith.constant 0 : i32
    %c0_i32_1 = arith.constant 0 : i32
    %c0_i32_2 = arith.constant 0 : i32
    return %arg0, %c0_i32, %c0_i32_0, %c0_i32_1 : i32, i32, i32, i32
  }
  func.func @transform_1(%arg0: i32) -> (i32, i32, i32) {
    %c0_i32 = arith.constant 0 : i32
    %c0_i32_0 = arith.constant 0 : i32
    %c0_i32_1 = arith.constant 0 : i32
    %c0_i32_2 = arith.constant 0 : i32
    return %c0_i32, %c0_i32_0, %c0_i32_1 : i32, i32, i32
  }
  func.func @transform_2(%arg0: i32) -> (i32, i32) {
    %c0_i32 = arith.constant 0 : i32
    %c0_i32_0 = arith.constant 0 : i32
    %c0_i32_1 = arith.constant 0 : i32
    return %c0_i32, %c0_i32_0 : i32, i32
  }
  func.func @transform_3(%arg0: i32) -> (i32, i32) {
    %c0_i32 = arith.constant 0 : i32
    %c0_i32_0 = arith.constant 0 : i32
    return %arg0, %c0_i32 : i32, i32
  }
}

</mosaic_0001>

<llo_original>
// kernel: tpu_custom_call.1
$region0: #{tpu_custom_call.1}
  #allocation0 [shape = 'u32[]', space=smem, size = 0x4, offset = 0x4, fixed_abs, tag = 'smem constant byte address 0x4 - core index']
  #allocation1 [shape = 'u32[144,128]{1,0:T(1,128)}', space=vmem, size = 0x12000, scoped, tag = 'internal scratch']
  %s0 = inlined_call_operand.hbm [shape: f32[16,2,8,128], index: 0, kind: input, shape index: {}]
  %s1 = inlined_call_operand.hbm [shape: f32[2,128,128], index: 1, kind: input, shape index: {}]
  %s2 = inlined_call_operand.vmem [shape: f32[2,128], index: 2, kind: input, shape index: {}]
  %s3 = inlined_call_operand.hbm [shape: f32[128,128], index: 3, kind: output, shape index: {}]
  %s4 = sld [smem:[#allocation0]]
  $region30: #{tpu_custom_call.1} parent=0
    _
  %s6 = ssub.s32 1, %s4
  %s7 = scalar_select 0, %s6, %s4
  $region1: #{tpu_custom_call.1} parent=0
    #allocation2 [shape = 'u8[131072]{0}', space=vmem, size = 0x20000, scoped, tag = 'input window, operand 0, single buffered']
    #allocation3 [shape = 's32[1]{0}', space=sflag, size = 0x4, scoped, tag = 'scoped memory for tpu_custom_call.1']
    #allocation4 [shape = 's32[1]{0}', space=sflag, size = 0x4, scoped, tag = 'scoped memory for tpu_custom_call.1']
    #allocation5 [shape = 'u8[131072]{0}', space=vmem, size = 0x20000, scoped, tag = 'input window, operand 1, single buffered']
    #allocation6 [shape = 's32[1]{0}', space=sflag, size = 0x4, scoped, tag = 'scoped memory for tpu_custom_call.1']
    #allocation7 [shape = 'u8[65536]{0}', space=vmem, size = 0x10000, scoped, tag = 'output window, operand 0, single buffered']
    %8 = vsyncpa [#allocation3], 0
    %9 = vsyncpa [#allocation6], 0
    %10 = vsyncpa [#allocation4], 0
    // Predicated region
    $region2: #{tpu_custom_call.1} parent=1 // pred_check
      _
    $region3: #{tpu_custom_call.1} parent=1 // pred_check_branch
      %12 = sbr.rel (0) target = $region5
    $region4: #{tpu_custom_call.1} parent=1 // pred_region
      %s14 = ssub.s32 4096, 4096
      %15 = vsyncadd [#allocation3], %s14
      %s16 = sshll.u32 [#allocation2], 4
      %s17 = int_to_ptr.vmem [resolvable:$true] %s16
      %22 = dma.hbm_to_vmem [thread:$0]  %s0, 4096, %s17, [#allocation3], 128, 128, 8
    $region5: #{tpu_custom_call.1} parent=1 // pred_fallthru
      _
    // Predicated region
    $region6: #{tpu_custom_call.1} parent=1 // pred_check
      _
    $region7: #{tpu_custom_call.1} parent=1 // pred_check_branch
      %24 = sbr.rel (0) target = $region9
    $region8: #{tpu_custom_call.1} parent=1 // pred_region
      %s26 = ssub.s32 4096, 4096
      %27 = vsyncadd [#allocation6], %s26
      %s28 = sshll.u32 [#allocation5], 4
      %s29 = int_to_ptr.vmem [resolvable:$true] %s28
      %34 = dma.hbm_to_vmem [thread:$0]  %s1, 4096, %s29, [#allocation6], 128, 128, 8
    $region9: #{tpu_custom_call.1} parent=1 // pred_fallthru
      _
    // Predicated region
    $region10: #{tpu_custom_call.1} parent=1 // pred_check
      _
    $region11: #{tpu_custom_call.1} parent=1 // pred_check_branch
      %36 = sbr.rel (0) target = $region13
    $region12: #{tpu_custom_call.1} parent=1 // pred_region
      _
    $region13: #{tpu_custom_call.1} parent=1 // pred_fallthru
      _
    // Predicated region
    $region14: #{tpu_custom_call.1} parent=1 // pred_check
      _
    $region15: #{tpu_custom_call.1} parent=1 // pred_check_branch
      %38 = sbr.rel (0) target = $region17
    $region16: #{tpu_custom_call.1} parent=1 // pred_region
      %39 = dma.done [#allocation3], 4096
    $region17: #{tpu_custom_call.1} parent=1 // pred_fallthru
      _
    // Predicated region
    $region18: #{tpu_custom_call.1} parent=1 // pred_check
      _
    $region19: #{tpu_custom_call.1} parent=1 // pred_check_branch
      %41 = sbr.rel (0) target = $region21
    $region20: #{tpu_custom_call.1} parent=1 // pred_region
      %42 = dma.done [#allocation6], 4096
    $region21: #{tpu_custom_call.1} parent=1 // pred_fallthru
      _
    %v43 = vld [vmem:[#allocation2] sm:$0xff]
    %v44 = vld [vmem:[#allocation2 + $0x8] sm:$0xff]
    %v45 = vld [vmem:[#allocation2 + $0x10] sm:$0xff]
    %v46 = vld [vmem:[#allocation2 + $0x18] sm:$0xff]
    %v47 = vld [vmem:[#allocation2 + $0x20] sm:$0xff]
    %v48 = vld [vmem:[#allocation2 + $0x28] sm:$0xff]
    %v49 = vld [vmem:[#allocation2 + $0x30] sm:$0xff]
    %v50 = vld [vmem:[#allocation2 + $0x38] sm:$0xff]
    %v51 = vld [vmem:[#allocation2 + $0x40] sm:$0xff]
    %v52 = vld [vmem:[#allocation2 + $0x48] sm:$0xff]
    %v53 = vld [vmem:[#allocation2 + $0x50] sm:$0xff]
    %v54 = vld [vmem:[#allocation2 + $0x58] sm:$0xff]
    %v55 = vld [vmem:[#allocation2 + $0x60] sm:$0xff]
    %v56 = vld [vmem:[#allocation2 + $0x68] sm:$0xff]
    %v57 = vld [vmem:[#allocation2 + $0x70] sm:$0xff]
    %v58 = vld [vmem:[#allocation2 + $0x78] sm:$0xff]
    %v59 = vld [vmem:[#allocation2 + $0x80] sm:$0xff]
    %v60 = vld [vmem:[#allocation2 + $0x88] sm:$0xff]
    %v61 = vld [vmem:[#allocation2 + $0x90] sm:$0xff]
    %v62 = vld [vmem:[#allocation2 + $0x98] sm:$0xff]
    %v63 = vld [vmem:[#allocation2 + $0xa0] sm:$0xff]
    %v64 = vld [vmem:[#allocation2 + $0xa8] sm:$0xff]
    %v65 = vld [vmem:[#allocation2 + $0xb0] sm:$0xff]
    %v66 = vld [vmem:[#allocation2 + $0xb8] sm:$0xff]
    %v67 = vld [vmem:[#allocation2 + $0xc0] sm:$0xff]
    %v68 = vld [vmem:[#allocation2 + $0xc8] sm:$0xff]
    %v69 = vld [vmem:[#allocation2 + $0xd0] sm:$0xff]
    %v70 = vld [vmem:[#allocation2 + $0xd8] sm:$0xff]
    %v71 = vld [vmem:[#allocation2 + $0xe0] sm:$0xff]
    %v72 = vld [vmem:[#allocation2 + $0xe8] sm:$0xff]
    %v73 = vld [vmem:[#allocation2 + $0xf0] sm:$0xff]
    %v74 = vld [vmem:[#allocation2 + $0xf8] sm:$0xff]
    %75 = vadd.xlane.f32.xlu0 %v43
    %v76 = vpop.xlane.xlu0 %75
    %77 = vadd.xlane.f32.xlu0 %v45
    %v78 = vpop.xlane.xlu0 %77
    %79 = vadd.xlane.f32.xlu0 %v47
    %v80 = vpop.xlane.xlu0 %79
    %81 = vadd.xlane.f32.xlu0 %v49
    %v82 = vpop.xlane.xlu0 %81
    %83 = vadd.xlane.f32.xlu0 %v51
    %v84 = vpop.xlane.xlu0 %83
    %85 = vadd.xlane.f32.xlu0 %v53
    %v86 = vpop.xlane.xlu0 %85
    %87 = vadd.xlane.f32.xlu0 %v55
    %v88 = vpop.xlane.xlu0 %87
    %89 = vadd.xlane.f32.xlu0 %v57
    %v90 = vpop.xlane.xlu0 %89
    %91 = vadd.xlane.f32.xlu0 %v59
    %v92 = vpop.xlane.xlu0 %91
    %93 = vadd.xlane.f32.xlu0 %v61
    %v94 = vpop.xlane.xlu0 %93
    %95 = vadd.xlane.f32.xlu0 %v63
    %v96 = vpop.xlane.xlu0 %95
    %97 = vadd.xlane.f32.xlu0 %v65
    %v98 = vpop.xlane.xlu0 %97
    %99 = vadd.xlane.f32.xlu0 %v67
    %v100 = vpop.xlane.xlu0 %99
    %101 = vadd.xlane.f32.xlu0 %v69
    %v102 = vpop.xlane.xlu0 %101
    %103 = vadd.xlane.f32.xlu0 %v71
    %v104 = vpop.xlane.xlu0 %103
    %105 = vadd.xlane.f32.xlu0 %v73
    %v106 = vpop.xlane.xlu0 %105
    %107 = vadd.xlane.f32.xlu0 %v44
    %v108 = vpop.xlane.xlu0 %107
    %109 = vadd.xlane.f32.xlu0 %v46
    %v110 = vpop.xlane.xlu0 %109
    %111 = vadd.xlane.f32.xlu0 %v48
    %v112 = vpop.xlane.xlu0 %111
    %113 = vadd.xlane.f32.xlu0 %v50
    %v114 = vpop.xlane.xlu0 %113
    %115 = vadd.xlane.f32.xlu0 %v52
    %v116 = vpop.xlane.xlu0 %115
    %117 = vadd.xlane.f32.xlu0 %v54
    %v118 = vpop.xlane.xlu0 %117
    %119 = vadd.xlane.f32.xlu0 %v56
    %v120 = vpop.xlane.xlu0 %119
    %121 = vadd.xlane.f32.xlu0 %v58
    %v122 = vpop.xlane.xlu0 %121
    %123 = vadd.xlane.f32.xlu0 %v60
    %v124 = vpop.xlane.xlu0 %123
    %125 = vadd.xlane.f32.xlu0 %v62
    %v126 = vpop.xlane.xlu0 %125
    %127 = vadd.xlane.f32.xlu0 %v64
    %v128 = vpop.xlane.xlu0 %127
    %129 = vadd.xlane.f32.xlu0 %v66
    %v130 = vpop.xlane.xlu0 %129
    %131 = vadd.xlane.f32.xlu0 %v68
    %v132 = vpop.xlane.xlu0 %131
    %133 = vadd.xlane.f32.xlu0 %v70
    %v134 = vpop.xlane.xlu0 %133
    %135 = vadd.xlane.f32.xlu0 %v72
    %v136 = vpop.xlane.xlu0 %135
    %137 = vadd.xlane.f32.xlu0 %v74
    %v138 = vpop.xlane.xlu0 %137
    %v139 = vadd.f32 %v76, %v108
    %v140 = vadd.f32 %v78, %v110
    %v141 = vadd.f32 %v80, %v112
    %v142 = vadd.f32 %v82, %v114
    %v143 = vadd.f32 %v84, %v116
    %v144 = vadd.f32 %v86, %v118
    %v145 = vadd.f32 %v88, %v120
    %v146 = vadd.f32 %v90, %v122
    %v147 = vadd.f32 %v92, %v124
    %v148 = vadd.f32 %v94, %v126
    %v149 = vadd.f32 %v96, %v128
    %v150 = vadd.f32 %v98, %v130
    %v151 = vadd.f32 %v100, %v132
    %v152 = vadd.f32 %v102, %v134
    %v153 = vadd.f32 %v104, %v136
    %v154 = vadd.f32 %v106, %v138
    %v155 = vmul.f32 %v43, %v43
    %v156 = vmul.f32 %v45, %v45
    %v157 = vmul.f32 %v47, %v47
    %v158 = vmul.f32 %v49, %v49
    %v159 = vmul.f32 %v51, %v51
    %v160 = vmul.f32 %v53, %v53
    %v161 = vmul.f32 %v55, %v55
    %v162 = vmul.f32 %v57, %v57
    %v163 = vmul.f32 %v59, %v59
    %v164 = vmul.f32 %v61, %v61
    %v165 = vmul.f32 %v63, %v63
    %v166 = vmul.f32 %v65, %v65
    %v167 = vmul.f32 %v67, %v67
    %v168 = vmul.f32 %v69, %v69
    %v169 = vmul.f32 %v71, %v71
    %v170 = vmul.f32 %v73, %v73
    %171 = vadd.xlane.f32.xlu0 %v155
    %v172 = vpop.xlane.xlu0 %171
    %173 = vadd.xlane.f32.xlu0 %v156
    %v174 = vpop.xlane.xlu0 %173
    %175 = vadd.xlane.f32.xlu0 %v157
    %v176 = vpop.xlane.xlu0 %175
    %177 = vadd.xlane.f32.xlu0 %v158
    %v178 = vpop.xlane.xlu0 %177
    %179 = vadd.xlane.f32.xlu0 %v159
    %v180 = vpop.xlane.xlu0 %179
    %181 = vadd.xlane.f32.xlu0 %v160
    %v182 = vpop.xlane.xlu0 %181
    %183 = vadd.xlane.f32.xlu0 %v161
    %v184 = vpop.xlane.xlu0 %183
    %185 = vadd.xlane.f32.xlu0 %v162
    %v186 = vpop.xlane.xlu0 %185
    %187 = vadd.xlane.f32.xlu0 %v163
    %v188 = vpop.xlane.xlu0 %187
    %189 = vadd.xlane.f32.xlu0 %v164
    %v190 = vpop.xlane.xlu0 %189
    %191 = vadd.xlane.f32.xlu0 %v165
    %v192 = vpop.xlane.xlu0 %191
    %193 = vadd.xlane.f32.xlu0 %v166
    %v194 = vpop.xlane.xlu0 %193
    %195 = vadd.xlane.f32.xlu0 %v167
    %v196 = vpop.xlane.xlu0 %195
    %197 = vadd.xlane.f32.xlu0 %v168
    %v198 = vpop.xlane.xlu0 %197
    %199 = vadd.xlane.f32.xlu0 %v169
    %v200 = vpop.xlane.xlu0 %199
    %201 = vadd.xlane.f32.xlu0 %v170
    %v202 = vpop.xlane.xlu0 %201
    %v203 = vmul.f32 %v44, %v44
    %v204 = vmul.f32 %v46, %v46
    %v205 = vmul.f32 %v48, %v48
    %v206 = vmul.f32 %v50, %v50
    %v207 = vmul.f32 %v52, %v52
    %v208 = vmul.f32 %v54, %v54
    %v209 = vmul.f32 %v56, %v56
    %v210 = vmul.f32 %v58, %v58
    %v211 = vmul.f32 %v60, %v60
    %v212 = vmul.f32 %v62, %v62
    %v213 = vmul.f32 %v64, %v64
    %v214 = vmul.f32 %v66, %v66
    %v215 = vmul.f32 %v68, %v68
    %v216 = vmul.f32 %v70, %v70
    %v217 = vmul.f32 %v72, %v72
    %v218 = vmul.f32 %v74, %v74
    %219 = vadd.xlane.f32.xlu0 %v203
    %v220 = vpop.xlane.xlu0 %219
    %221 = vadd.xlane.f32.xlu0 %v204
    %v222 = vpop.xlane.xlu0 %221
    %223 = vadd.xlane.f32.xlu0 %v205
    %v224 = vpop.xlane.xlu0 %223
    %225 = vadd.xlane.f32.xlu0 %v206
    %v226 = vpop.xlane.xlu0 %225
    %227 = vadd.xlane.f32.xlu0 %v207
    %v228 = vpop.xlane.xlu0 %227
    %229 = vadd.xlane.f32.xlu0 %v208
    %v230 = vpop.xlane.xlu0 %229
    %231 = vadd.xlane.f32.xlu0 %v209
    %v232 = vpop.xlane.xlu0 %231
    %233 = vadd.xlane.f32.xlu0 %v210
    %v234 = vpop.xlane.xlu0 %233
    %235 = vadd.xlane.f32.xlu0 %v211
    %v236 = vpop.xlane.xlu0 %235
    %237 = vadd.xlane.f32.xlu0 %v212
    %v238 = vpop.xlane.xlu0 %237
    %239 = vadd.xlane.f32.xlu0 %v213
    %v240 = vpop.xlane.xlu0 %239
    %241 = vadd.xlane.f32.xlu0 %v214
    %v242 = vpop.xlane.xlu0 %241
    %243 = vadd.xlane.f32.xlu0 %v215
    %v244 = vpop.xlane.xlu0 %243
    %245 = vadd.xlane.f32.xlu0 %v216
    %v246 = vpop.xlane.xlu0 %245
    %247 = vadd.xlane.f32.xlu0 %v217
    %v248 = vpop.xlane.xlu0 %247
    %249 = vadd.xlane.f32.xlu0 %v218
    %v250 = vpop.xlane.xlu0 %249
    %v251 = vadd.f32 %v172, %v220
    %v252 = vadd.f32 %v174, %v222
    %v253 = vadd.f32 %v176, %v224
    %v254 = vadd.f32 %v178, %v226
    %v255 = vadd.f32 %v180, %v228
    %v256 = vadd.f32 %v182, %v230
    %v257 = vadd.f32 %v184, %v232
    %v258 = vadd.f32 %v186, %v234
    %v259 = vadd.f32 %v188, %v236
    %v260 = vadd.f32 %v190, %v238
    %v261 = vadd.f32 %v192, %v240
    %v262 = vadd.f32 %v194, %v242
    %v263 = vadd.f32 %v196, %v244
    %v264 = vadd.f32 %v198, %v246
    %v265 = vadd.f32 %v200, %v248
    %v266 = vadd.f32 %v202, %v250
    %v267 = vmul.f32 %v139, 0.00390625
    %v268 = vmul.f32 %v140, 0.00390625
    %v269 = vmul.f32 %v141, 0.00390625
    %v270 = vmul.f32 %v142, 0.00390625
    %v271 = vmul.f32 %v143, 0.00390625
    %v272 = vmul.f32 %v144, 0.00390625
    %v273 = vmul.f32 %v145, 0.00390625
    %v274 = vmul.f32 %v146, 0.00390625
    %v275 = vmul.f32 %v147, 0.00390625
    %v276 = vmul.f32 %v148, 0.00390625
    %v277 = vmul.f32 %v149, 0.00390625
    %v278 = vmul.f32 %v150, 0.00390625
    %v279 = vmul.f32 %v151, 0.00390625
    %v280 = vmul.f32 %v152, 0.00390625
    %v281 = vmul.f32 %v153, 0.00390625
    %v282 = vmul.f32 %v154, 0.00390625
    %v283 = vmul.f32 %v251, 0.00390625
    %v284 = vmul.f32 %v252, 0.00390625
    %v285 = vmul.f32 %v253, 0.00390625
    %v286 = vmul.f32 %v254, 0.00390625
    %v287 = vmul.f32 %v255, 0.00390625
    %v288 = vmul.f32 %v256, 0.00390625
    %v289 = vmul.f32 %v257, 0.00390625
    %v290 = vmul.f32 %v258, 0.00390625
    %v291 = vmul.f32 %v259, 0.00390625
    %v292 = vmul.f32 %v260, 0.00390625
    %v293 = vmul.f32 %v261, 0.00390625
    %v294 = vmul.f32 %v262, 0.00390625
    %v295 = vmul.f32 %v263, 0.00390625
    %v296 = vmul.f32 %v264, 0.00390625
    %v297 = vmul.f32 %v265, 0.00390625
    %v298 = vmul.f32 %v266, 0.00390625
    %v299 = vmul.f32 %v267, %v267
    %v300 = vmul.f32 %v268, %v268
    %v301 = vmul.f32 %v269, %v269
    %v302 = vmul.f32 %v270, %v270
    %v303 = vmul.f32 %v271, %v271
    %v304 = vmul.f32 %v272, %v272
    %v305 = vmul.f32 %v273, %v273
    %v306 = vmul.f32 %v274, %v274
    %v307 = vmul.f32 %v275, %v275
    %v308 = vmul.f32 %v276, %v276
    %v309 = vmul.f32 %v277, %v277
    %v310 = vmul.f32 %v278, %v278
    %v311 = vmul.f32 %v279, %v279
    %v312 = vmul.f32 %v280, %v280
    %v313 = vmul.f32 %v281, %v281
    %v314 = vmul.f32 %v282, %v282
    %v315 = vsub.f32 %v283, %v299
    %v316 = vsub.f32 %v284, %v300
    %v317 = vsub.f32 %v285, %v301
    %v318 = vsub.f32 %v286, %v302
    %v319 = vsub.f32 %v287, %v303
    %v320 = vsub.f32 %v288, %v304
    %v321 = vsub.f32 %v289, %v305
    %v322 = vsub.f32 %v290, %v306
    %v323 = vsub.f32 %v291, %v307
    %v324 = vsub.f32 %v292, %v308
    %v325 = vsub.f32 %v293, %v309
    %v326 = vsub.f32 %v294, %v310
    %v327 = vsub.f32 %v295, %v311
    %v328 = vsub.f32 %v296, %v312
    %v329 = vsub.f32 %v297, %v313
    %v330 = vsub.f32 %v298, %v314
    %v331 = vadd.f32 %v315, 1e-05
    %v332 = vadd.f32 %v316, 1e-05
    %v333 = vadd.f32 %v317, 1e-05
    %v334 = vadd.f32 %v318, 1e-05
    %v335 = vadd.f32 %v319, 1e-05
    %v336 = vadd.f32 %v320, 1e-05
    %v337 = vadd.f32 %v321, 1e-05
    %v338 = vadd.f32 %v322, 1e-05
    %v339 = vadd.f32 %v323, 1e-05
    %v340 = vadd.f32 %v324, 1e-05
    %v341 = vadd.f32 %v325, 1e-05
    %v342 = vadd.f32 %v326, 1e-05
    %v343 = vadd.f32 %v327, 1e-05
    %v344 = vadd.f32 %v328, 1e-05
    %v345 = vadd.f32 %v329, 1e-05
    %v346 = vadd.f32 %v330, 1e-05
    %v347 = vrsqrt.pop %v331
    %v348 = vrsqrt.pop %v332
    %v349 = vrsqrt.pop %v333
    %v350 = vrsqrt.pop %v334
    %v351 = vrsqrt.pop %v335
    %v352 = vrsqrt.pop %v336
    %v353 = vrsqrt.pop %v337
    %v354 = vrsqrt.pop %v338
    %v355 = vrsqrt.pop %v339
    %v356 = vrsqrt.pop %v340
    %v357 = vrsqrt.pop %v341
    %v358 = vrsqrt.pop %v342
    %v359 = vrsqrt.pop %v343
    %v360 = vrsqrt.pop %v344
    %v361 = vrsqrt.pop %v345
    %v362 = vrsqrt.pop %v346
    %v363 = vld [vmem:[#allocation5] sm:$0xff]
    %v364 = vld [vmem:[#allocation5 + $0x8] sm:$0xff]
    %v365 = vld [vmem:[#allocation5 + $0x10] sm:$0xff]
    %v366 = vld [vmem:[#allocation5 + $0x18] sm:$0xff]
    %v367 = vld [vmem:[#allocation5 + $0x20] sm:$0xff]
    %v368 = vld [vmem:[#allocation5 + $0x28] sm:$0xff]
    %v369 = vld [vmem:[#allocation5 + $0x30] sm:$0xff]
    %v370 = vld [vmem:[#allocation5 + $0x38] sm:$0xff]
    %v371 = vld [vmem:[#allocation5 + $0x40] sm:$0xff]
    %v372 = vld [vmem:[#allocation5 + $0x48] sm:$0xff]
    %v373 = vld [vmem:[#allocation5 + $0x50] sm:$0xff]
    %v374 = vld [vmem:[#allocation5 + $0x58] sm:$0xff]
    %v375 = vld [vmem:[#allocation5 + $0x60] sm:$0xff]
    %v376 = vld [vmem:[#allocation5 + $0x68] sm:$0xff]
    %v377 = vld [vmem:[#allocation5 + $0x70] sm:$0xff]
    %v378 = vld [vmem:[#allocation5 + $0x78] sm:$0xff]
    %s379 = scalar_lea.vmem [#allocation5], 128
    %v380 = vld [vmem:[%s379] sm:$0xff]
    %v381 = vld [vmem:[%s379 + $0x8] sm:$0xff]
    %v382 = vld [vmem:[%s379 + $0x10] sm:$0xff]
    %v383 = vld [vmem:[%s379 + $0x18] sm:$0xff]
    %v384 = vld [vmem:[%s379 + $0x20] sm:$0xff]
    %v385 = vld [vmem:[%s379 + $0x28] sm:$0xff]
    %v386 = vld [vmem:[%s379 + $0x30] sm:$0xff]
    %v387 = vld [vmem:[%s379 + $0x38] sm:$0xff]
    %v388 = vld [vmem:[%s379 + $0x40] sm:$0xff]
    %v389 = vld [vmem:[%s379 + $0x48] sm:$0xff]
    %v390 = vld [vmem:[%s379 + $0x50] sm:$0xff]
    %v391 = vld [vmem:[%s379 + $0x58] sm:$0xff]
    %v392 = vld [vmem:[%s379 + $0x60] sm:$0xff]
    %v393 = vld [vmem:[%s379 + $0x68] sm:$0xff]
    %v394 = vld [vmem:[%s379 + $0x70] sm:$0xff]
    %v395 = vld [vmem:[%s379 + $0x78] sm:$0xff]
    %396 = vmatprep.subr.mxu0 0.0
    %397 = vmatpush1.msra.mxu0 %v395
    %398 = vmatprep.subr.mxu0 0.0
    %399 = vmatpush1.msra.mxu0 %v394
    %400 = vmatprep.subr.mxu0 0.0
    %401 = vmatpush1.msra.mxu0 %v393
    %402 = vmatprep.subr.mxu0 0.0
    %403 = vmatpush1.msra.mxu0 %v392
    %404 = vmatprep.subr.mxu0 0.0
    %405 = vmatpush1.msra.mxu0 %v391
    %406 = vmatprep.subr.mxu0 0.0
    %407 = vmatpush1.msra.mxu0 %v390
    %408 = vmatprep.subr.mxu0 0.0
    %409 = vmatpush1.msra.mxu0 %v389
    %410 = vmatprep.subr.mxu0 0.0
    %411 = vmatpush1.msra.mxu0 %v388
    %412 = vmatprep.subr.mxu0 0.0
    %413 = vmatpush1.msra.mxu0 %v387
    %414 = vmatprep.subr.mxu0 0.0
    %415 = vmatpush1.msra.mxu0 %v386
    %416 = vmatprep.subr.mxu0 0.0
    %417 = vmatpush1.msra.mxu0 %v385
    %418 = vmatprep.subr.mxu0 0.0
    %419 = vmatpush1.msra.mxu0 %v384
    %420 = vmatprep.subr.mxu0 0.0
    %421 = vmatpush1.msra.mxu0 %v383
    %422 = vmatprep.subr.mxu0 0.0
    %423 = vmatpush1.msra.mxu0 %v382
    %424 = vmatprep.subr.mxu0 0.0
    %425 = vmatpush1.msra.mxu0 %v381
    %426 = vmatprep.subr.mxu0 0.0
    %427 = vmatpush1.msra.mxu0 %v380
    %428 = vmatprep.subr.mxu0 0.0
    %429 = vmatpush2.msra.mxu0 0.0
    %430 = vmatprep.subr.mxu0 0.0
    %431 = vmatpush2.msra.mxu0 0.0
    %432 = vmatprep.subr.mxu0 0.0
    %433 = vmatpush2.msra.mxu0 0.0
    %434 = vmatprep.subr.mxu0 0.0
    %435 = vmatpush2.msra.mxu0 0.0
    %436 = vmatprep.subr.mxu0 0.0
    %437 = vmatpush2.msra.mxu0 0.0
    %438 = vmatprep.subr.mxu0 0.0
    %439 = vmatpush2.msra.mxu0 0.0
    %440 = vmatprep.subr.mxu0 0.0
    %441 = vmatpush2.msra.mxu0 0.0
    %442 = vmatprep.subr.mxu0 0.0
    %443 = vmatpush2.msra.mxu0 0.0
    %444 = vmatprep.subr.mxu0 0.0
    %445 = vmatpush2.msra.mxu0 0.0
    %446 = vmatprep.subr.mxu0 0.0
    %447 = vmatpush2.msra.mxu0 0.0
    %448 = vmatprep.subr.mxu0 0.0
    %449 = vmatpush2.msra.mxu0 0.0
    %450 = vmatprep.subr.mxu0 0.0
    %451 = vmatpush2.msra.mxu0 0.0
    %452 = vmatprep.subr.mxu0 0.0
    %453 = vmatpush2.msra.mxu0 0.0
    %454 = vmatprep.subr.mxu0 0.0
    %455 = vmatpush2.msra.mxu0 0.0
    %456 = vmatprep.subr.mxu0 0.0
    %457 = vmatpush2.msra.mxu0 0.0
    %458 = vmatprep.subr.mxu0 0.0
    %459 = vmatpush2.msra.mxu0 0.0
    %460 = vmatprep.mubr.f32.mxu0 0.0
    %461 = vmatmul.mubr.f32.gmra.mxu0 %v44
    %v462 = vpop.f32.mrf.mxu0
    %v463 = vadd.f32 0.0, %v462
    %v464 = vpop.f32.mrf.mxu0
    %465 = vmatprep.mubr.f32.mxu0 0.0
    %466 = vmatmul.mubr.f32.gmra.mxu0 %v46
    %v467 = vpop.f32.mrf.mxu0
    %v468 = vadd.f32 0.0, %v467
    %v469 = vpop.f32.mrf.mxu0
    %470 = vmatprep.mubr.f32.mxu0 0.0
    %471 = vmatmul.mubr.f32.gmra.mxu0 %v48
    %v472 = vpop.f32.mrf.mxu0
    %v473 = vadd.f32 0.0, %v472
    %v474 = vpop.f32.mrf.mxu0
    %475 = vmatprep.mubr.f32.mxu0 0.0
    %476 = vmatmul.mubr.f32.gmra.mxu0 %v50
    %v477 = vpop.f32.mrf.mxu0
    %v478 = vadd.f32 0.0, %v477
    %v479 = vpop.f32.mrf.mxu0
    %480 = vmatprep.mubr.f32.mxu0 0.0
    %481 = vmatmul.mubr.f32.gmra.mxu0 %v52
    %v482 = vpop.f32.mrf.mxu0
    %v483 = vadd.f32 0.0, %v482
    %v484 = vpop.f32.mrf.mxu0
    %485 = vmatprep.mubr.f32.mxu0 0.0
    %486 = vmatmul.mubr.f32.gmra.mxu0 %v54
    %v487 = vpop.f32.mrf.mxu0
    %v488 = vadd.f32 0.0, %v487
    %v489 = vpop.f32.mrf.mxu0
    %490 = vmatprep.mubr.f32.mxu0 0.0
    %491 = vmatmul.mubr.f32.gmra.mxu0 %v56
    %v492 = vpop.f32.mrf.mxu0
    %v493 = vadd.f32 0.0, %v492
    %v494 = vpop.f32.mrf.mxu0
    %495 = vmatprep.mubr.f32.mxu0 0.0
    %496 = vmatmul.mubr.f32.gmra.mxu0 %v58
    %v497 = vpop.f32.mrf.mxu0
    %v498 = vadd.f32 0.0, %v497
    %v499 = vpop.f32.mrf.mxu0
    %500 = vmatprep.mubr.f32.mxu0 0.0
    %501 = vmatmul.mubr.f32.gmra.mxu0 %v60
    %v502 = vpop.f32.mrf.mxu0
    %v503 = vadd.f32 0.0, %v502
    %v504 = vpop.f32.mrf.mxu0
    %505 = vmatprep.mubr.f32.mxu0 0.0
    %506 = vmatmul.mubr.f32.gmra.mxu0 %v62
    %v507 = vpop.f32.mrf.mxu0
    %v508 = vadd.f32 0.0, %v507
    %v509 = vpop.f32.mrf.mxu0
    %510 = vmatprep.mubr.f32.mxu0 0.0
    %511 = vmatmul.mubr.f32.gmra.mxu0 %v64
    %v512 = vpop.f32.mrf.mxu0
    %v513 = vadd.f32 0.0, %v512
    %v514 = vpop.f32.mrf.mxu0
    %515 = vmatprep.mubr.f32.mxu0 0.0
    %516 = vmatmul.mubr.f32.gmra.mxu0 %v66
    %v517 = vpop.f32.mrf.mxu0
    %v518 = vadd.f32 0.0, %v517
    %v519 = vpop.f32.mrf.mxu0
    %520 = vmatprep.mubr.f32.mxu0 0.0
    %521 = vmatmul.mubr.f32.gmra.mxu0 %v68
    %v522 = vpop.f32.mrf.mxu0
    %v523 = vadd.f32 0.0, %v522
    %v524 = vpop.f32.mrf.mxu0
    %525 = vmatprep.mubr.f32.mxu0 0.0
    %526 = vmatmul.mubr.f32.gmra.mxu0 %v70
    %v527 = vpop.f32.mrf.mxu0
    %v528 = vadd.f32 0.0, %v527
    %v529 = vpop.f32.mrf.mxu0
    %530 = vmatprep.mubr.f32.mxu0 0.0
    %531 = vmatmul.mubr.f32.gmra.mxu0 %v72
    %v532 = vpop.f32.mrf.mxu0
    %v533 = vadd.f32 0.0, %v532
    %v534 = vpop.f32.mrf.mxu0
    %535 = vmatprep.mubr.f32.mxu0 0.0
    %536 = vmatmul.mubr.f32.gmra.mxu0 %v74
    %v537 = vpop.f32.mrf.mxu0
    %v538 = vadd.f32 0.0, %v537
    %v539 = vpop.f32.mrf.mxu0
    %540 = vdwg.mxu0
    %541 = vmatprep.subr.mxu0 0.0
    %542 = vmatpush1.msra.mxu0 %v378
    %543 = vmatprep.subr.mxu0 0.0
    %544 = vmatpush1.msra.mxu0 %v377
    %545 = vmatprep.subr.mxu0 0.0
    %546 = vmatpush1.msra.mxu0 %v376
    %547 = vmatprep.subr.mxu0 0.0
    %548 = vmatpush1.msra.mxu0 %v375
    %549 = vmatprep.subr.mxu0 0.0
    %550 = vmatpush1.msra.mxu0 %v374
    %551 = vmatprep.subr.mxu0 0.0
    %552 = vmatpush1.msra.mxu0 %v373
    %553 = vmatprep.subr.mxu0 0.0
    %554 = vmatpush1.msra.mxu0 %v372
    %555 = vmatprep.subr.mxu0 0.0
    %556 = vmatpush1.msra.mxu0 %v371
    %557 = vmatprep.subr.mxu0 0.0
    %558 = vmatpush1.msra.mxu0 %v370
    %559 = vmatprep.subr.mxu0 0.0
    %560 = vmatpush1.msra.mxu0 %v369
    %561 = vmatprep.subr.mxu0 0.0
    %562 = vmatpush1.msra.mxu0 %v368
    %563 = vmatprep.subr.mxu0 0.0
    %564 = vmatpush1.msra.mxu0 %v367
    %565 = vmatprep.subr.mxu0 0.0
    %566 = vmatpush1.msra.mxu0 %v366
    %567 = vmatprep.subr.mxu0 0.0
    %568 = vmatpush1.msra.mxu0 %v365
    %569 = vmatprep.subr.mxu0 0.0
    %570 = vmatpush1.msra.mxu0 %v364
    %571 = vmatprep.subr.mxu0 0.0
    %572 = vmatpush1.msra.mxu0 %v363
    %573 = vmatprep.subr.mxu0 0.0
    %574 = vmatpush2.msra.mxu0 0.0
    %575 = vmatprep.subr.mxu0 0.0
    %576 = vmatpush2.msra.mxu0 0.0
    %577 = vmatprep.subr.mxu0 0.0
    %578 = vmatpush2.msra.mxu0 0.0
    %579 = vmatprep.subr.mxu0 0.0
    %580 = vmatpush2.msra.mxu0 0.0
    %581 = vmatprep.subr.mxu0 0.0
    %582 = vmatpush2.msra.mxu0 0.0
    %583 = vmatprep.subr.mxu0 0.0
    %584 = vmatpush2.msra.mxu0 0.0
    %585 = vmatprep.subr.mxu0 0.0
    %586 = vmatpush2.msra.mxu0 0.0
    %587 = vmatprep.subr.mxu0 0.0
    %588 = vmatpush2.msra.mxu0 0.0
    %589 = vmatprep.subr.mxu0 0.0
    %590 = vmatpush2.msra.mxu0 0.0
    %591 = vmatprep.subr.mxu0 0.0
    %592 = vmatpush2.msra.mxu0 0.0
    %593 = vmatprep.subr.mxu0 0.0
    %594 = vmatpush2.msra.mxu0 0.0
    %595 = vmatprep.subr.mxu0 0.0
    %596 = vmatpush2.msra.mxu0 0.0
    %597 = vmatprep.subr.mxu0 0.0
    %598 = vmatpush2.msra.mxu0 0.0
    %599 = vmatprep.subr.mxu0 0.0
    %600 = vmatpush2.msra.mxu0 0.0
    %601 = vmatprep.subr.mxu0 0.0
    %602 = vmatpush2.msra.mxu0 0.0
    %603 = vmatprep.subr.mxu0 0.0
    %604 = vmatpush2.msra.mxu0 0.0
    %605 = vmatprep.mubr.f32.mxu0 0.0
    %606 = vmatmul.mubr.f32.gmra.mxu0 %v43
    %v607 = vpop.f32.mrf.mxu0
    %v608 = vadd.f32 %v463, %v607
    %v609 = vpop.f32.mrf.mxu0
    %610 = vmatprep.mubr.f32.mxu0 0.0
    %611 = vmatmul.mubr.f32.gmra.mxu0 %v45
    %v612 = vpop.f32.mrf.mxu0
    %v613 = vadd.f32 %v468, %v612
    %v614 = vpop.f32.mrf.mxu0
    %615 = vmatprep.mubr.f32.mxu0 0.0
    %616 = vmatmul.mubr.f32.gmra.mxu0 %v47
    %v617 = vpop.f32.mrf.mxu0
    %v618 = vadd.f32 %v473, %v617
    %v619 = vpop.f32.mrf.mxu0
    %620 = vmatprep.mubr.f32.mxu0 0.0
    %621 = vmatmul.mubr.f32.gmra.mxu0 %v49
    %v622 = vpop.f32.mrf.mxu0
    %v623 = vadd.f32 %v478, %v622
    %v624 = vpop.f32.mrf.mxu0
    %625 = vmatprep.mubr.f32.mxu0 0.0
    %626 = vmatmul.mubr.f32.gmra.mxu0 %v51
    %v627 = vpop.f32.mrf.mxu0
    %v628 = vadd.f32 %v483, %v627
    %v629 = vpop.f32.mrf.mxu0
    %630 = vmatprep.mubr.f32.mxu0 0.0
    %631 = vmatmul.mubr.f32.gmra.mxu0 %v53
    %v632 = vpop.f32.mrf.mxu0
    %v633 = vadd.f32 %v488, %v632
    %v634 = vpop.f32.mrf.mxu0
    %635 = vmatprep.mubr.f32.mxu0 0.0
    %636 = vmatmul.mubr.f32.gmra.mxu0 %v55
    %v637 = vpop.f32.mrf.mxu0
    %v638 = vadd.f32 %v493, %v637
    %v639 = vpop.f32.mrf.mxu0
    %640 = vmatprep.mubr.f32.mxu0 0.0
    %641 = vmatmul.mubr.f32.gmra.mxu0 %v57
    %v642 = vpop.f32.mrf.mxu0
    %v643 = vadd.f32 %v498, %v642
    %v644 = vpop.f32.mrf.mxu0
    %645 = vmatprep.mubr.f32.mxu0 0.0
    %646 = vmatmul.mubr.f32.gmra.mxu0 %v59
    %v647 = vpop.f32.mrf.mxu0
    %v648 = vadd.f32 %v503, %v647
    %v649 = vpop.f32.mrf.mxu0
    %650 = vmatprep.mubr.f32.mxu0 0.0
    %651 = vmatmul.mubr.f32.gmra.mxu0 %v61
    %v652 = vpop.f32.mrf.mxu0
    %v653 = vadd.f32 %v508, %v652
    %v654 = vpop.f32.mrf.mxu0
    %655 = vmatprep.mubr.f32.mxu0 0.0
    %656 = vmatmul.mubr.f32.gmra.mxu0 %v63
    %v657 = vpop.f32.mrf.mxu0
    %v658 = vadd.f32 %v513, %v657
    %v659 = vpop.f32.mrf.mxu0
    %660 = vmatprep.mubr.f32.mxu0 0.0
    %661 = vmatmul.mubr.f32.gmra.mxu0 %v65
    %v662 = vpop.f32.mrf.mxu0
    %v663 = vadd.f32 %v518, %v662
    %v664 = vpop.f32.mrf.mxu0
    %665 = vmatprep.mubr.f32.mxu0 0.0
    %666 = vmatmul.mubr.f32.gmra.mxu0 %v67
    %v667 = vpop.f32.mrf.mxu0
    %v668 = vadd.f32 %v523, %v667
    %v669 = vpop.f32.mrf.mxu0
    %670 = vmatprep.mubr.f32.mxu0 0.0
    %671 = vmatmul.mubr.f32.gmra.mxu0 %v69
    %v672 = vpop.f32.mrf.mxu0
    %v673 = vadd.f32 %v528, %v672
    %v674 = vpop.f32.mrf.mxu0
    %675 = vmatprep.mubr.f32.mxu0 0.0
    %676 = vmatmul.mubr.f32.gmra.mxu0 %v71
    %v677 = vpop.f32.mrf.mxu0
    %v678 = vadd.f32 %v533, %v677
    %v679 = vpop.f32.mrf.mxu0
    %680 = vmatprep.mubr.f32.mxu0 0.0
    %681 = vmatmul.mubr.f32.gmra.mxu0 %v73
    %v682 = vpop.f32.mrf.mxu0
    %v683 = vadd.f32 %v538, %v682
    %v684 = vpop.f32.mrf.mxu0
    %685 = vdwg.mxu0
    %v686 = vld [vmem:[%s2] sm:$0x3]
    %v687 = vlaneseq
    %v688 = vshrl.u32 %v687, 7
    %v689 = vsub.s32 0, %v688
    %v690 = vrot.slane %v686, %v689
    %v691 = vmul.f32 %v267, %v690
    %v692 = vmul.f32 %v268, %v690
    %v693 = vmul.f32 %v269, %v690
    %v694 = vmul.f32 %v270, %v690
    %v695 = vmul.f32 %v271, %v690
    %v696 = vmul.f32 %v272, %v690
    %v697 = vmul.f32 %v273, %v690
    %v698 = vmul.f32 %v274, %v690
    %v699 = vmul.f32 %v275, %v690
    %v700 = vmul.f32 %v276, %v690
    %v701 = vmul.f32 %v277, %v690
    %v702 = vmul.f32 %v278, %v690
    %v703 = vmul.f32 %v279, %v690
    %v704 = vmul.f32 %v280, %v690
    %v705 = vmul.f32 %v281, %v690
    %v706 = vmul.f32 %v282, %v690
    %v707 = vsub.f32 %v608, %v691
    %v708 = vsub.f32 %v613, %v692
    %v709 = vsub.f32 %v618, %v693
    %v710 = vsub.f32 %v623, %v694
    %v711 = vsub.f32 %v628, %v695
    %v712 = vsub.f32 %v633, %v696
    %v713 = vsub.f32 %v638, %v697
    %v714 = vsub.f32 %v643, %v698
    %v715 = vsub.f32 %v648, %v699
    %v716 = vsub.f32 %v653, %v700
    %v717 = vsub.f32 %v658, %v701
    %v718 = vsub.f32 %v663, %v702
    %v719 = vsub.f32 %v668, %v703
    %v720 = vsub.f32 %v673, %v704
    %v721 = vsub.f32 %v678, %v705
    %v722 = vsub.f32 %v683, %v706
    %v723 = vmul.f32 %v707, %v347
    %v724 = vmul.f32 %v708, %v348
    %v725 = vmul.f32 %v709, %v349
    %v726 = vmul.f32 %v710, %v350
    %v727 = vmul.f32 %v711, %v351
    %v728 = vmul.f32 %v712, %v352
    %v729 = vmul.f32 %v713, %v353
    %v730 = vmul.f32 %v714, %v354
    %v731 = vmul.f32 %v715, %v355
    %v732 = vmul.f32 %v716, %v356
    %v733 = vmul.f32 %v717, %v357
    %v734 = vmul.f32 %v718, %v358
    %v735 = vmul.f32 %v719, %v359
    %v736 = vmul.f32 %v720, %v360
    %v737 = vmul.f32 %v721, %v361
    %v738 = vmul.f32 %v722, %v362
    %v739 = vlaneseq
    %v740 = vshrl.u32 %v739, 7
    %v741 = vsub.s32 1, %v740
    %v742 = vrot.slane %v686, %v741
    %v743 = vadd.f32 %v723, %v742
    %v744 = vadd.f32 %v724, %v742
    %v745 = vadd.f32 %v725, %v742
    %v746 = vadd.f32 %v726, %v742
    %v747 = vadd.f32 %v727, %v742
    %v748 = vadd.f32 %v728, %v742
    %v749 = vadd.f32 %v729, %v742
    %v750 = vadd.f32 %v730, %v742
    %v751 = vadd.f32 %v731, %v742
    %v752 = vadd.f32 %v732, %v742
    %v753 = vadd.f32 %v733, %v742
    %v754 = vadd.f32 %v734, %v742
    %v755 = vadd.f32 %v735, %v742
    %v756 = vadd.f32 %v736, %v742
    %v757 = vadd.f32 %v737, %v742
    %v758 = vadd.f32 %v738, %v742
    %759 = vst [vmem:[#allocation7] sm:$0xff] %v743
    %760 = vst [vmem:[#allocation7 + $0x8] sm:$0xff] %v744
    %761 = vst [vmem:[#allocation7 + $0x10] sm:$0xff] %v745
    %762 = vst [vmem:[#allocation7 + $0x18] sm:$0xff] %v746
    %763 = vst [vmem:[#allocation7 + $0x20] sm:$0xff] %v747
    %764 = vst [vmem:[#allocation7 + $0x28] sm:$0xff] %v748
    %765 = vst [vmem:[#allocation7 + $0x30] sm:$0xff] %v749
    %766 = vst [vmem:[#allocation7 + $0x38] sm:$0xff] %v750
    %767 = vst [vmem:[#allocation7 + $0x40] sm:$0xff] %v751
    %768 = vst [vmem:[#allocation7 + $0x48] sm:$0xff] %v752
    %769 = vst [vmem:[#allocation7 + $0x50] sm:$0xff] %v753
    %770 = vst [vmem:[#allocation7 + $0x58] sm:$0xff] %v754
    %771 = vst [vmem:[#allocation7 + $0x60] sm:$0xff] %v755
    %772 = vst [vmem:[#allocation7 + $0x68] sm:$0xff] %v756
    %773 = vst [vmem:[#allocation7 + $0x70] sm:$0xff] %v757
    %774 = vst [vmem:[#allocation7 + $0x78] sm:$0xff] %v758
    // Predicated region
    $region22: #{tpu_custom_call.1} parent=1 // pred_check
      _
    $region23: #{tpu_custom_call.1} parent=1 // pred_check_branch
      %776 = sbr.rel (0) target = $region25
    $region24: #{tpu_custom_call.1} parent=1 // pred_region
      %s778 = ssub.s32 2048, 2048
      %779 = vsyncadd [#allocation4], %s778
      %s780 = sshll.u32 [#allocation7], 4
      %s781 = int_to_ptr.vmem [resolvable:$true] %s780
      %786 = dma.vmem_to_hbm [thread:$0]  %s781, 2048, %s3, [#allocation4], 128, 128, 8
    $region25: #{tpu_custom_call.1} parent=1 // pred_fallthru
      _
    // Predicated region
    $region26: #{tpu_custom_call.1} parent=1 // pred_check
      _
    $region27: #{tpu_custom_call.1} parent=1 // pred_check_branch
      %788 = sbr.rel (0) target = $region29
    $region28: #{tpu_custom_call.1} parent=1 // pred_region
      %789 = dma.done [#allocation4], 2048
    $region29: #{tpu_custom_call.1} parent=1 // pred_fallthru
      _
    %790 = vsyncpa [#allocation3], 1
    %791 = vsyncpa [#allocation6], 1
    %792 = vsyncpa [#allocation4], 1

</llo_original>
